<compile_context>
chip_gen: v7x
topology: tpu7x:2x2x1
jax: 0.10.0
libtpu: 0.0.40
codegen_flags: <defaults>
</compile_context>

<pallas_src>
import jax
import jax.numpy as jnp
from jax import lax
from jax.experimental import pallas as pl
from jax.experimental.pallas import tpu as pltpu

HIDDEN = 64
HIDDEN_PAD = 128   # lane-pad the hidden dim so every tile is vreg/MXU dense
TILE_CAP = 4096    # batch-tile cap: ~10-15 MiB VMEM footprint, fits v5e/v6e/v7x


def dqn_kernel(x_ref, w1_ref, w2_ref, aux_ref, o_ref):
    # aux rows: 0 = b1, 1 = b2, 2 = w3 row, 3 = [b3, 0, ...]   (all f32)
    b1 = aux_ref[0:1, :]            # (1, H)
    b2 = aux_ref[1:2, :]            # (1, H)
    w3r = aux_ref[2:3, :]           # (1, H)
    b3 = aux_ref[3:4, 0:1]          # (1, 1)

    # Layer 1: (TM, S) f32 @ (S, H) f32 -> f32.  All-f32 operands keep the
    # kernel faithful to the PyTorch forward; the extra MXU passes are fully
    # hidden under per-step overhead at this model size.
    h = jnp.dot(x_ref[...], w1_ref[...], preferred_element_type=jnp.float32)
    h = jnp.maximum(h + b1, 0.0)

    # Layer 2: (TM, H) @ (H, H)
    h = jnp.dot(h, w2_ref[...], preferred_element_type=jnp.float32)
    h = jnp.maximum(h + b2, 0.0)

    # Layer 3: q = w3_row . h^T -> (1, TM).  Contracting both lane dims keeps
    # the result lane-dense (no N=1 lane-sparse matmul, no masked (B,1) store).
    q = lax.dot_general(w3r, h, (((1,), (1,)), ((), ())),
                        preferred_element_type=jnp.float32)
    o_ref[...] = (q + b3).astype(o_ref.dtype)


def _round_up(n, m):
    return ((n + m - 1) // m) * m


def _choose_block_b(B, cap=TILE_CAP):
    """Lane-dense (multiple-of-128) batch tile.

    Small B -> one 128-row tile.  Larger B -> aim for >= 2 grid steps (so the
    'parallel' batch axis lands on both v7x TensorCores) while letting the tile
    grow up to `cap` so huge batches don't pay thousands of fixed-cost steps.
    """
    if B <= 128:
        return 128
    half = _round_up((B + 1) // 2, 128)
    return max(128, min(half, cap))


def dqn_forward(x, packed_params, *, block_b=None):
    """x: [B, state_dim] float32.  Returns [B, 1] float32 Q-values."""
    w1p, w2p, aux = packed_params
    B, S = x.shape

    if block_b is None:
        block_b = _choose_block_b(B)

    G = -(-B // block_b)          # cdiv
    B_pad = G * block_b
    # Only a ragged tail is padded; when B % block_b == 0 the input goes
    # straight into the kernel (no extra HBM round trip, no dtype cast).
    x_pad = x if B_pad == B else jnp.pad(x, ((0, B_pad - B), (0, 0)))

    # NOTE(perf): the (block_b, S) x tile is lane-sparse for small S; at the
    # current cap its copy-in stays hidden under step overhead.  If a trace
    # ever shows it exposed, present x lane-densely ([B,S] -> [B*S/128, 128])
    # and restructure layer 1 in-kernel.

    slab = pl.pallas_call(
        dqn_kernel,
        out_shape=jax.ShapeDtypeStruct((G, block_b), jnp.float32),
        grid=(G,),
        in_specs=[
            pl.BlockSpec((block_b, S), lambda i: (i, 0)),   # batch-tiled input
            pl.BlockSpec(w1p.shape, lambda i: (0, 0)),      # weights resident
            pl.BlockSpec(w2p.shape, lambda i: (0, 0)),
            pl.BlockSpec(aux.shape, lambda i: (0, 0)),
        ],
        # lane-dense (1, block_b) rows of the [G, block_b] output slab
        out_specs=pl.BlockSpec((1, block_b), lambda i: (i, 0)),
        compiler_params=pltpu.CompilerParams(
            dimension_semantics=("parallel",),   # 2x on v7x's two TCs; no-op v5e/v6e
            vmem_limit_bytes=32 * 1024 * 1024,   # ~2-3x footprint at the cap; v7x-safe
        ),
    )(x_pad, w1p, w2p, aux)

    # slab row i holds Q-values for batch rows [i*block_b, (i+1)*block_b)
    return slab.reshape(B_pad, 1)[:B]


# ----------------------------- parameters ---------------------------------

def xavier_uniform(key, fan_in, fan_out):
    # nn.init.xavier_uniform_ (gain=1): U(-a, a), a = sqrt(6/(fan_in+fan_out)).
    # Stored as (in, out) so the kernel computes x @ W.
    a = (6.0 / (fan_in + fan_out)) ** 0.5
    return jax.random.uniform(key, (fan_in, fan_out), jnp.float32, -a, a)


def init_params(key, state_dim, hidden=HIDDEN):
    k1, k2, k3 = jax.random.split(key, 3)
    w1 = xavier_uniform(k1, state_dim, hidden)
    b1 = jnp.zeros((hidden,), jnp.float32)        # nn.init.constant_(bias, 0)
    w2 = xavier_uniform(k2, hidden, hidden)
    b2 = jnp.zeros((hidden,), jnp.float32)
    w3 = xavier_uniform(k3, hidden, 1)
    b3 = jnp.zeros((), jnp.float32)
    return (w1, b1, w2, b2, w3, b3)


def pack_params(params, hidden_pad=HIDDEN_PAD):
    """Pad hidden dim to 128 (zeros -> numerically exact) and pack biases +
    third-layer weight + b3 into one (4, 128) f32 aux array (one DMA, not 4).
    All operands stay f32."""
    w1, b1, w2, b2, w3, b3 = params
    S, H = w1.shape
    pad = hidden_pad - H
    w1p = jnp.pad(w1, ((0, 0), (0, pad)))                  # (S, 128)   f32
    w2p = jnp.pad(w2, ((0, pad), (0, pad)))                # (128, 128) f32
    aux = jnp.zeros((4, hidden_pad), jnp.float32)
    aux = aux.at[0, :H].set(b1)
    aux = aux.at[1, :H].set(b2)
    aux = aux.at[2, :H].set(w3[:, 0])
    aux = aux.at[3, 0].set(b3)
    return (w1p, w2p, aux)


# ------------------------------- demo --------------------------------------

def ref_forward(x, params):
    """Exact f32 PyTorch-style forward."""
    w1, b1, w2, b2, w3, b3 = params
    hp = lax.Precision.HIGHEST
    h = jnp.maximum(jnp.dot(x, w1, precision=hp) + b1[None, :], 0.0)
    h = jnp.maximum(jnp.dot(h, w2, precision=hp) + b2[None, :], 0.0)
    return jnp.dot(h, w3, precision=hp) + b3


if __name__ == "__main__":
    key = jax.random.PRNGKey(0)
    k_x, k_x2, k_p = jax.random.split(key, 3)

    state_dim = 8   # stand-in for len(env.reset())
    params = init_params(k_p, state_dim)
    packed = pack_params(params)

    # small ragged batch: one 128-row tile, batch tail zero-padded then sliced off
    x_small = jax.random.normal(k_x, (37, state_dim), jnp.float32)
    out_small = dqn_forward(x_small, packed)
    jax.block_until_ready(out_small)
    assert out_small.shape == (37, 1)
    assert jnp.allclose(out_small, ref_forward(x_small, params),
                        atol=2e-3, rtol=2e-3)

    # mid-size batch: exercises the G >= 2 path (two 256-row tiles, v7x 2-TC split)
    x_mid = jax.random.normal(k_x2, (300, state_dim), jnp.float32)
    out_mid = dqn_forward(x_mid, packed)
    jax.block_until_ready(out_mid)
    assert out_mid.shape == (300, 1)
    assert jnp.allclose(out_mid, ref_forward(x_mid, params),
                        atol=2e-3, rtol=2e-3)

    print("KERNEL_OK")
</pallas_src>

<mosaic_0001>
module attributes {stable_mosaic.version = 11 : i64} {
  func.func @dqn_kernel(%arg0: i32, %arg1: memref<128x8xf32, #tpu.memory_space<vmem>>, %arg2: memref<8x128xf32, #tpu.memory_space<vmem>>, %arg3: memref<128x128xf32, #tpu.memory_space<vmem>>, %arg4: memref<4x128xf32, #tpu.memory_space<vmem>>, %arg5: memref<1x128xf32, #tpu.memory_space<vmem>>) attributes {dimension_semantics = [#tpu.dimension_semantics<parallel>], iteration_bounds = array<i64: 1>, scalar_prefetch = 0 : i64, scratch_operands = 0 : i64, tpu.core_type = #tpu.core_type<tc>, window_params = [{transform_indices = @transform_0, window_bounds = array<i64: 128, 8>}, {pipeline_mode = #tpu.pipeline_mode<synchronous>, transform_indices = @transform_1, window_bounds = array<i64: 8, 128>}, {pipeline_mode = #tpu.pipeline_mode<synchronous>, transform_indices = @transform_2, window_bounds = array<i64: 128, 128>}, {pipeline_mode = #tpu.pipeline_mode<synchronous>, transform_indices = @transform_3, window_bounds = array<i64: 4, 128>}, {transform_indices = @transform_4, window_bounds = array<i64: 1, 128>}]} {
    %c0 = arith.constant 0 : index
    %c0_0 = arith.constant 0 : index
    %0 = vector.load %arg4[%c0, %c0_0] : memref<4x128xf32, #tpu.memory_space<vmem>>, vector<1x128xf32>
    %c1 = arith.constant 1 : index
    %c0_1 = arith.constant 0 : index
    %1 = vector.load %arg4[%c1, %c0_1] : memref<4x128xf32, #tpu.memory_space<vmem>>, vector<1x128xf32>
    %c2 = arith.constant 2 : index
    %c0_2 = arith.constant 0 : index
    %2 = vector.load %arg4[%c2, %c0_2] : memref<4x128xf32, #tpu.memory_space<vmem>>, vector<1x128xf32>
    %c3 = arith.constant 3 : index
    %c0_3 = arith.constant 0 : index
    %3 = vector.load %arg4[%c3, %c0_3] : memref<4x128xf32, #tpu.memory_space<vmem>>, vector<1x1xf32>
    %c0_4 = arith.constant 0 : index
    %c0_5 = arith.constant 0 : index
    %4 = vector.load %arg1[%c0_4, %c0_5] : memref<128x8xf32, #tpu.memory_space<vmem>>, vector<128x8xf32>
    %c0_6 = arith.constant 0 : index
    %c0_7 = arith.constant 0 : index
    %5 = vector.load %arg2[%c0_6, %c0_7] : memref<8x128xf32, #tpu.memory_space<vmem>>, vector<8x128xf32>
    %cst = arith.constant dense<0.000000e+00> : vector<128x128xf32>
    %6 = tpu.matmul %4, %5, %cst {dimension_numbers = #tpu.dot_dimension_numbers<[1], [0], [0], [1], [0, 0, 1, 1], [], []>} : vector<128x8xf32>, vector<8x128xf32>, vector<128x128xf32> -> vector<128x128xf32>
    %7 = vector.broadcast %0 : vector<1x128xf32> to vector<128x128xf32>
    %8 = arith.addf %6, %7 : vector<128x128xf32>
    %cst_8 = arith.constant 0.000000e+00 : f32
    %9 = vector.broadcast %cst_8 : f32 to vector<128x128xf32>
    %10 = arith.maximumf %8, %9 : vector<128x128xf32>
    %c0_9 = arith.constant 0 : index
    %c0_10 = arith.constant 0 : index
    %11 = vector.load %arg3[%c0_9, %c0_10] : memref<128x128xf32, #tpu.memory_space<vmem>>, vector<128x128xf32>
    %cst_11 = arith.constant dense<0.000000e+00> : vector<128x128xf32>
    %12 = tpu.matmul %10, %11, %cst_11 {dimension_numbers = #tpu.dot_dimension_numbers<[1], [0], [0], [1], [0, 0, 1, 1], [], []>} : vector<128x128xf32>, vector<128x128xf32>, vector<128x128xf32> -> vector<128x128xf32>
    %13 = vector.broadcast %1 : vector<1x128xf32> to vector<128x128xf32>
    %14 = arith.addf %12, %13 : vector<128x128xf32>
    %cst_12 = arith.constant 0.000000e+00 : f32
    %15 = vector.broadcast %cst_12 : f32 to vector<128x128xf32>
    %16 = arith.maximumf %14, %15 : vector<128x128xf32>
    %cst_13 = arith.constant dense<0.000000e+00> : vector<1x128xf32>
    %17 = tpu.matmul %2, %16, %cst_13 {dimension_numbers = #tpu.dot_dimension_numbers<[1], [1], [0], [0], [0, 0, 1, 0], [], []>} : vector<1x128xf32>, vector<128x128xf32>, vector<1x128xf32> -> vector<1x128xf32>
    %18 = vector.broadcast %3 : vector<1x1xf32> to vector<1x128xf32>
    %19 = arith.addf %17, %18 : vector<1x128xf32>
    %c0_14 = arith.constant 0 : index
    %c0_15 = arith.constant 0 : index
    %20 = vector.load %arg5[%c0_14, %c0_15] : memref<1x128xf32, #tpu.memory_space<vmem>>, vector<1x128xf32>
    tpu.vector_store %arg5[%c0_14, %c0_15], %19 {strides = array<i32>} : memref<1x128xf32, #tpu.memory_space<vmem>>, vector<1x128xf32>,
    return
  }
  func.func @transform_0(%arg0: i32) -> (i32, i32) {
    %c0_i32 = arith.constant 0 : i32
    %c0_i32_0 = arith.constant 0 : i32
    return %arg0, %c0_i32 : i32, i32
  }
  func.func @transform_1(%arg0: i32) -> (i32, i32) {
    %c0_i32 = arith.constant 0 : i32
    %c0_i32_0 = arith.constant 0 : i32
    %c0_i32_1 = arith.constant 0 : i32
    return %c0_i32, %c0_i32_0 : i32, i32
  }
  func.func @transform_2(%arg0: i32) -> (i32, i32) {
    %c0_i32 = arith.constant 0 : i32
    %c0_i32_0 = arith.constant 0 : i32
    %c0_i32_1 = arith.constant 0 : i32
    return %c0_i32, %c0_i32_0 : i32, i32
  }
  func.func @transform_3(%arg0: i32) -> (i32, i32) {
    %c0_i32 = arith.constant 0 : i32
    %c0_i32_0 = arith.constant 0 : i32
    %c0_i32_1 = arith.constant 0 : i32
    return %c0_i32, %c0_i32_0 : i32, i32
  }
  func.func @transform_4(%arg0: i32) -> (i32, i32) {
    %c0_i32 = arith.constant 0 : i32
    %c0_i32_0 = arith.constant 0 : i32
    return %arg0, %c0_i32 : i32, i32
  }
}

</mosaic_0001>

<llo_original>
// kernel: tpu_custom_call.1
$region0: #{tpu_custom_call.1}
  #allocation0 [shape = 'u32[]', space=smem, size = 0x4, offset = 0x4, fixed_abs, tag = 'smem constant byte address 0x4 - core index']
  #allocation1 [shape = 'u32[144,128]{1,0:T(1,128)}', space=vmem, size = 0x12000, scoped, tag = 'internal scratch']
  %s0 = inlined_call_operand.vmem [shape: f32[128,8], index: 0, kind: input, shape index: {}]
  %s1 = inlined_call_operand.vmem [shape: f32[8,128], index: 1, kind: input, shape index: {}]
  %s2 = inlined_call_operand.vmem [shape: f32[128,128], index: 2, kind: input, shape index: {}]
  %s3 = inlined_call_operand.vmem [shape: f32[4,128], index: 3, kind: input, shape index: {}]
  %s4 = inlined_call_operand.hbm [shape: f32[1,128], index: 4, kind: output, shape index: {}]
  %s5 = sld [smem:[#allocation0]]
  $region26: #{tpu_custom_call.1} parent=0
    _
  %s7 = ssub.s32 1, %s5
  %s8 = scalar_select 0, %s7, %s5
  $region1: #{tpu_custom_call.1} parent=0
    #allocation2 [shape = 'u8[512]{0}', space=vmem, size = 0x400, scoped, tag = 'output window, operand 0, single buffered']
    #allocation3 [shape = 's32[1]{0}', space=sflag, size = 0x4, scoped, tag = 'scoped memory for tpu_custom_call.1']
    %9 = vsyncpa [#allocation3], 0
    // Predicated region
    $region2: #{tpu_custom_call.1} parent=1 // pred_check
      _
    $region3: #{tpu_custom_call.1} parent=1 // pred_check_branch
      %11 = sbr.rel (0) target = $region5
    $region4: #{tpu_custom_call.1} parent=1 // pred_region
      _
    $region5: #{tpu_custom_call.1} parent=1 // pred_fallthru
      _
    // Predicated region
    $region6: #{tpu_custom_call.1} parent=1 // pred_check
      _
    $region7: #{tpu_custom_call.1} parent=1 // pred_check_branch
      %13 = sbr.rel (0) target = $region9
    $region8: #{tpu_custom_call.1} parent=1 // pred_region
      _
    $region9: #{tpu_custom_call.1} parent=1 // pred_fallthru
      _
    // Predicated region
    $region10: #{tpu_custom_call.1} parent=1 // pred_check
      _
    $region11: #{tpu_custom_call.1} parent=1 // pred_check_branch
      %15 = sbr.rel (0) target = $region13
    $region12: #{tpu_custom_call.1} parent=1 // pred_region
      _
    $region13: #{tpu_custom_call.1} parent=1 // pred_fallthru
      _
    // Predicated region
    $region14: #{tpu_custom_call.1} parent=1 // pred_check
      _
    $region15: #{tpu_custom_call.1} parent=1 // pred_check_branch
      %17 = sbr.rel (0) target = $region17
    $region16: #{tpu_custom_call.1} parent=1 // pred_region
      _
    $region17: #{tpu_custom_call.1} parent=1 // pred_fallthru
      _
    %v18 = vld [vmem:[%s3] sm:$0x1]
    %v19 = vld [vmem:[%s3 + $0x1] sm:$0x1]
    %v20 = vld [vmem:[%s3 + $0x2] sm:$0x1]
    %v21 = vld [vmem:[%s3 + $0x3] sm:$0x1]
    %v22 = vld [vmem:[%s0] sm:$0xff]
    %v23 = vld [vmem:[%s0 + $0x8] sm:$0xff]
    %v24 = vld [vmem:[%s0 + $0x10] sm:$0xff]
    %v25 = vld [vmem:[%s0 + $0x18] sm:$0xff]
    %v26 = vld [vmem:[%s0 + $0x20] sm:$0xff]
    %v27 = vld [vmem:[%s0 + $0x28] sm:$0xff]
    %v28 = vld [vmem:[%s0 + $0x30] sm:$0xff]
    %v29 = vld [vmem:[%s0 + $0x38] sm:$0xff]
    %v30 = vld [vmem:[%s0 + $0x40] sm:$0xff]
    %v31 = vld [vmem:[%s0 + $0x48] sm:$0xff]
    %v32 = vld [vmem:[%s0 + $0x50] sm:$0xff]
    %v33 = vld [vmem:[%s0 + $0x58] sm:$0xff]
    %v34 = vld [vmem:[%s0 + $0x60] sm:$0xff]
    %v35 = vld [vmem:[%s0 + $0x68] sm:$0xff]
    %v36 = vld [vmem:[%s0 + $0x70] sm:$0xff]
    %v37 = vld [vmem:[%s0 + $0x78] sm:$0xff]
    %v38 = vld [vmem:[%s1] sm:$0xff]
    %v39 = vlaneseq
    %v40 = vshrl.u32 %v39, 7
    %v41 = vsub.s32 0, %v40
    %v42 = vrot.slane %v18, %v41
    %vm43 = vcmask 64512
    %v45 = vsel %vm43, %v22, 0
    %v48 = vsel %vm43, %v23, 0
    %v51 = vsel %vm43, %v24, 0
    %v54 = vsel %vm43, %v25, 0
    %v57 = vsel %vm43, %v26, 0
    %v60 = vsel %vm43, %v27, 0
    %v63 = vsel %vm43, %v28, 0
    %v66 = vsel %vm43, %v29, 0
    %v69 = vsel %vm43, %v30, 0
    %v72 = vsel %vm43, %v31, 0
    %v75 = vsel %vm43, %v32, 0
    %v78 = vsel %vm43, %v33, 0
    %v81 = vsel %vm43, %v34, 0
    %v84 = vsel %vm43, %v35, 0
    %v87 = vsel %vm43, %v36, 0
    %v90 = vsel %vm43, %v37, 0
    %92 = vmatprep.subr.mxu0 0.0
    %93 = vmatpush1.msra.mxu0 %v38
    %94 = vmatprep.subr.mxu0 0.0
    %95 = vmatpush1.msra.mxu0 0.0
    %96 = vmatprep.subr.mxu0 0.0
    %97 = vmatpush1.msra.mxu0 0.0
    %98 = vmatprep.subr.mxu0 0.0
    %99 = vmatpush1.msra.mxu0 0.0
    %100 = vmatprep.subr.mxu0 0.0
    %101 = vmatpush1.msra.mxu0 0.0
    %102 = vmatprep.subr.mxu0 0.0
    %103 = vmatpush1.msra.mxu0 0.0
    %104 = vmatprep.subr.mxu0 0.0
    %105 = vmatpush1.msra.mxu0 0.0
    %106 = vmatprep.subr.mxu0 0.0
    %107 = vmatpush1.msra.mxu0 0.0
    %108 = vmatprep.subr.mxu0 0.0
    %109 = vmatpush1.msra.mxu0 0.0
    %110 = vmatprep.subr.mxu0 0.0
    %111 = vmatpush1.msra.mxu0 0.0
    %112 = vmatprep.subr.mxu0 0.0
    %113 = vmatpush1.msra.mxu0 0.0
    %114 = vmatprep.subr.mxu0 0.0
    %115 = vmatpush1.msra.mxu0 0.0
    %116 = vmatprep.subr.mxu0 0.0
    %117 = vmatpush1.msra.mxu0 0.0
    %118 = vmatprep.subr.mxu0 0.0
    %119 = vmatpush1.msra.mxu0 0.0
    %120 = vmatprep.subr.mxu0 0.0
    %121 = vmatpush1.msra.mxu0 0.0
    %122 = vmatprep.subr.mxu0 0.0
    %123 = vmatpush1.msra.mxu0 0.0
    %124 = vmatprep.subr.mxu0 0.0
    %125 = vmatpush1.msra.mxu0 0.0
    %126 = vmatprep.subr.mxu0 0.0
    %127 = vmatpush1.msra.mxu0 0.0
    %128 = vmatprep.subr.mxu0 0.0
    %129 = vmatpush1.msra.mxu0 0.0
    %130 = vmatprep.subr.mxu0 0.0
    %131 = vmatpush1.msra.mxu0 0.0
    %132 = vmatprep.subr.mxu0 0.0
    %133 = vmatpush1.msra.mxu0 0.0
    %134 = vmatprep.subr.mxu0 0.0
    %135 = vmatpush1.msra.mxu0 0.0
    %136 = vmatprep.subr.mxu0 0.0
    %137 = vmatpush1.msra.mxu0 0.0
    %138 = vmatprep.subr.mxu0 0.0
    %139 = vmatpush1.msra.mxu0 0.0
    %140 = vmatprep.subr.mxu0 0.0
    %141 = vmatpush1.msra.mxu0 0.0
    %142 = vmatprep.subr.mxu0 0.0
    %143 = vmatpush1.msra.mxu0 0.0
    %144 = vmatprep.subr.mxu0 0.0
    %145 = vmatpush1.msra.mxu0 0.0
    %146 = vmatprep.subr.mxu0 0.0
    %147 = vmatpush1.msra.mxu0 0.0
    %148 = vmatprep.subr.mxu0 0.0
    %149 = vmatpush1.msra.mxu0 0.0
    %150 = vmatprep.subr.mxu0 0.0
    %151 = vmatpush1.msra.mxu0 0.0
    %152 = vmatprep.subr.mxu0 0.0
    %153 = vmatpush1.msra.mxu0 0.0
    %154 = vmatprep.subr.mxu0 0.0
    %155 = vmatpush1.msra.mxu0 0.0
    %156 = vmatprep.mubr.f32.mxu0 0.0
    %157 = vmatmul.mubr.f32.gmra.mrb[0].mxu0 %v45
    %v158 = vpop.f32.mrb[0].mxu0
    %v159 = vadd.f32 %v42, %v158
    %v160 = vpop.f32.mrb[0].mxu0
    %161 = vmatprep.mubr.f32.mxu0 0.0
    %162 = vmatmul.mubr.f32.gmra.mrb[0].mxu0 %v48
    %v163 = vpop.f32.mrb[0].mxu0
    %v164 = vadd.f32 %v42, %v163
    %v165 = vpop.f32.mrb[0].mxu0
    %166 = vmatprep.mubr.f32.mxu0 0.0
    %167 = vmatmul.mubr.f32.gmra.mrb[0].mxu0 %v51
    %v168 = vpop.f32.mrb[0].mxu0
    %v169 = vadd.f32 %v42, %v168
    %v170 = vpop.f32.mrb[0].mxu0
    %171 = vmatprep.mubr.f32.mxu0 0.0
    %172 = vmatmul.mubr.f32.gmra.mrb[0].mxu0 %v54
    %v173 = vpop.f32.mrb[0].mxu0
    %v174 = vadd.f32 %v42, %v173
    %v175 = vpop.f32.mrb[0].mxu0
    %176 = vmatprep.mubr.f32.mxu0 0.0
    %177 = vmatmul.mubr.f32.gmra.mrb[0].mxu0 %v57
    %v178 = vpop.f32.mrb[0].mxu0
    %v179 = vadd.f32 %v42, %v178
    %v180 = vpop.f32.mrb[0].mxu0
    %181 = vmatprep.mubr.f32.mxu0 0.0
    %182 = vmatmul.mubr.f32.gmra.mrb[0].mxu0 %v60
    %v183 = vpop.f32.mrb[0].mxu0
    %v184 = vadd.f32 %v42, %v183
    %v185 = vpop.f32.mrb[0].mxu0
    %186 = vmatprep.mubr.f32.mxu0 0.0
    %187 = vmatmul.mubr.f32.gmra.mrb[0].mxu0 %v63
    %v188 = vpop.f32.mrb[0].mxu0
    %v189 = vadd.f32 %v42, %v188
    %v190 = vpop.f32.mrb[0].mxu0
    %191 = vmatprep.mubr.f32.mxu0 0.0
    %192 = vmatmul.mubr.f32.gmra.mrb[0].mxu0 %v66
    %v193 = vpop.f32.mrb[0].mxu0
    %v194 = vadd.f32 %v42, %v193
    %v195 = vpop.f32.mrb[0].mxu0
    %196 = vmatprep.mubr.f32.mxu0 0.0
    %197 = vmatmul.mubr.f32.gmra.mrb[0].mxu0 %v69
    %v198 = vpop.f32.mrb[0].mxu0
    %v199 = vadd.f32 %v42, %v198
    %v200 = vpop.f32.mrb[0].mxu0
    %201 = vmatprep.mubr.f32.mxu0 0.0
    %202 = vmatmul.mubr.f32.gmra.mrb[0].mxu0 %v72
    %v203 = vpop.f32.mrb[0].mxu0
    %v204 = vadd.f32 %v42, %v203
    %v205 = vpop.f32.mrb[0].mxu0
    %206 = vmatprep.mubr.f32.mxu0 0.0
    %207 = vmatmul.mubr.f32.gmra.mrb[0].mxu0 %v75
    %v208 = vpop.f32.mrb[0].mxu0
    %v209 = vadd.f32 %v42, %v208
    %v210 = vpop.f32.mrb[0].mxu0
    %211 = vmatprep.mubr.f32.mxu0 0.0
    %212 = vmatmul.mubr.f32.gmra.mrb[0].mxu0 %v78
    %v213 = vpop.f32.mrb[0].mxu0
    %v214 = vadd.f32 %v42, %v213
    %v215 = vpop.f32.mrb[0].mxu0
    %216 = vmatprep.mubr.f32.mxu0 0.0
    %217 = vmatmul.mubr.f32.gmra.mrb[0].mxu0 %v81
    %v218 = vpop.f32.mrb[0].mxu0
    %v219 = vadd.f32 %v42, %v218
    %v220 = vpop.f32.mrb[0].mxu0
    %221 = vmatprep.mubr.f32.mxu0 0.0
    %222 = vmatmul.mubr.f32.gmra.mrb[0].mxu0 %v84
    %v223 = vpop.f32.mrb[0].mxu0
    %v224 = vadd.f32 %v42, %v223
    %v225 = vpop.f32.mrb[0].mxu0
    %226 = vmatprep.mubr.f32.mxu0 0.0
    %227 = vmatmul.mubr.f32.gmra.mrb[0].mxu0 %v87
    %v228 = vpop.f32.mrb[0].mxu0
    %v229 = vadd.f32 %v42, %v228
    %v230 = vpop.f32.mrb[0].mxu0
    %231 = vmatprep.mubr.f32.mxu0 0.0
    %232 = vmatmul.mubr.f32.gmra.mrb[0].mxu0 %v90
    %v233 = vpop.f32.mrb[0].mxu0
    %v234 = vadd.f32 %v42, %v233
    %v235 = vpop.f32.mrb[0].mxu0
    %236 = vdwg.mxu0
    %v237 = vmax.f32 %v159, 0.0
    %v238 = vmax.f32 %v164, 0.0
    %v239 = vmax.f32 %v169, 0.0
    %v240 = vmax.f32 %v174, 0.0
    %v241 = vmax.f32 %v179, 0.0
    %v242 = vmax.f32 %v184, 0.0
    %v243 = vmax.f32 %v189, 0.0
    %v244 = vmax.f32 %v194, 0.0
    %v245 = vmax.f32 %v199, 0.0
    %v246 = vmax.f32 %v204, 0.0
    %v247 = vmax.f32 %v209, 0.0
    %v248 = vmax.f32 %v214, 0.0
    %v249 = vmax.f32 %v219, 0.0
    %v250 = vmax.f32 %v224, 0.0
    %v251 = vmax.f32 %v229, 0.0
    %v252 = vmax.f32 %v234, 0.0
    %v253 = vld [vmem:[%s2] sm:$0xff]
    %v254 = vld [vmem:[%s2 + $0x8] sm:$0xff]
    %v255 = vld [vmem:[%s2 + $0x10] sm:$0xff]
    %v256 = vld [vmem:[%s2 + $0x18] sm:$0xff]
    %v257 = vld [vmem:[%s2 + $0x20] sm:$0xff]
    %v258 = vld [vmem:[%s2 + $0x28] sm:$0xff]
    %v259 = vld [vmem:[%s2 + $0x30] sm:$0xff]
    %v260 = vld [vmem:[%s2 + $0x38] sm:$0xff]
    %v261 = vld [vmem:[%s2 + $0x40] sm:$0xff]
    %v262 = vld [vmem:[%s2 + $0x48] sm:$0xff]
    %v263 = vld [vmem:[%s2 + $0x50] sm:$0xff]
    %v264 = vld [vmem:[%s2 + $0x58] sm:$0xff]
    %v265 = vld [vmem:[%s2 + $0x60] sm:$0xff]
    %v266 = vld [vmem:[%s2 + $0x68] sm:$0xff]
    %v267 = vld [vmem:[%s2 + $0x70] sm:$0xff]
    %v268 = vld [vmem:[%s2 + $0x78] sm:$0xff]
    %v269 = vlaneseq
    %v270 = vshrl.u32 %v269, 7
    %v271 = vsub.s32 0, %v270
    %v272 = vrot.slane %v19, %v271
    %273 = vmatprep.subr.mxu0 0.0
    %274 = vmatpush1.msra.mxu0 %v253
    %275 = vmatprep.subr.mxu0 0.0
    %276 = vmatpush1.msra.mxu0 %v254
    %277 = vmatprep.subr.mxu0 0.0
    %278 = vmatpush1.msra.mxu0 %v255
    %279 = vmatprep.subr.mxu0 0.0
    %280 = vmatpush1.msra.mxu0 %v256
    %281 = vmatprep.subr.mxu0 0.0
    %282 = vmatpush1.msra.mxu0 %v257
    %283 = vmatprep.subr.mxu0 0.0
    %284 = vmatpush1.msra.mxu0 %v258
    %285 = vmatprep.subr.mxu0 0.0
    %286 = vmatpush1.msra.mxu0 %v259
    %287 = vmatprep.subr.mxu0 0.0
    %288 = vmatpush1.msra.mxu0 %v260
    %289 = vmatprep.subr.mxu0 0.0
    %290 = vmatpush1.msra.mxu0 %v261
    %291 = vmatprep.subr.mxu0 0.0
    %292 = vmatpush1.msra.mxu0 %v262
    %293 = vmatprep.subr.mxu0 0.0
    %294 = vmatpush1.msra.mxu0 %v263
    %295 = vmatprep.subr.mxu0 0.0
    %296 = vmatpush1.msra.mxu0 %v264
    %297 = vmatprep.subr.mxu0 0.0
    %298 = vmatpush1.msra.mxu0 %v265
    %299 = vmatprep.subr.mxu0 0.0
    %300 = vmatpush1.msra.mxu0 %v266
    %301 = vmatprep.subr.mxu0 0.0
    %302 = vmatpush1.msra.mxu0 %v267
    %303 = vmatprep.subr.mxu0 0.0
    %304 = vmatpush1.msra.mxu0 %v268
    %305 = vmatprep.subr.mxu0 0.0
    %306 = vmatpush1.msra.mxu0 0.0
    %307 = vmatprep.subr.mxu0 0.0
    %308 = vmatpush1.msra.mxu0 0.0
    %309 = vmatprep.subr.mxu0 0.0
    %310 = vmatpush1.msra.mxu0 0.0
    %311 = vmatprep.subr.mxu0 0.0
    %312 = vmatpush1.msra.mxu0 0.0
    %313 = vmatprep.subr.mxu0 0.0
    %314 = vmatpush1.msra.mxu0 0.0
    %315 = vmatprep.subr.mxu0 0.0
    %316 = vmatpush1.msra.mxu0 0.0
    %317 = vmatprep.subr.mxu0 0.0
    %318 = vmatpush1.msra.mxu0 0.0
    %319 = vmatprep.subr.mxu0 0.0
    %320 = vmatpush1.msra.mxu0 0.0
    %321 = vmatprep.subr.mxu0 0.0
    %322 = vmatpush1.msra.mxu0 0.0
    %323 = vmatprep.subr.mxu0 0.0
    %324 = vmatpush1.msra.mxu0 0.0
    %325 = vmatprep.subr.mxu0 0.0
    %326 = vmatpush1.msra.mxu0 0.0
    %327 = vmatprep.subr.mxu0 0.0
    %328 = vmatpush1.msra.mxu0 0.0
    %329 = vmatprep.subr.mxu0 0.0
    %330 = vmatpush1.msra.mxu0 0.0
    %331 = vmatprep.subr.mxu0 0.0
    %332 = vmatpush1.msra.mxu0 0.0
    %333 = vmatprep.subr.mxu0 0.0
    %334 = vmatpush1.msra.mxu0 0.0
    %335 = vmatprep.subr.mxu0 0.0
    %336 = vmatpush1.msra.mxu0 0.0
    %337 = vmatprep.mubr.f32.mxu0 0.0
    %338 = vmatmul.mubr.f32.gmra.mrb[0].mxu0 %v237
    %v339 = vpop.f32.mrb[0].mxu0
    %v340 = vadd.f32 %v272, %v339
    %v341 = vpop.f32.mrb[0].mxu0
    %342 = vmatprep.mubr.f32.mxu0 0.0
    %343 = vmatmul.mubr.f32.gmra.mrb[0].mxu0 %v238
    %v344 = vpop.f32.mrb[0].mxu0
    %v345 = vadd.f32 %v272, %v344
    %v346 = vpop.f32.mrb[0].mxu0
    %347 = vmatprep.mubr.f32.mxu0 0.0
    %348 = vmatmul.mubr.f32.gmra.mrb[0].mxu0 %v239
    %v349 = vpop.f32.mrb[0].mxu0
    %v350 = vadd.f32 %v272, %v349
    %v351 = vpop.f32.mrb[0].mxu0
    %352 = vmatprep.mubr.f32.mxu0 0.0
    %353 = vmatmul.mubr.f32.gmra.mrb[0].mxu0 %v240
    %v354 = vpop.f32.mrb[0].mxu0
    %v355 = vadd.f32 %v272, %v354
    %v356 = vpop.f32.mrb[0].mxu0
    %357 = vmatprep.mubr.f32.mxu0 0.0
    %358 = vmatmul.mubr.f32.gmra.mrb[0].mxu0 %v241
    %v359 = vpop.f32.mrb[0].mxu0
    %v360 = vadd.f32 %v272, %v359
    %v361 = vpop.f32.mrb[0].mxu0
    %362 = vmatprep.mubr.f32.mxu0 0.0
    %363 = vmatmul.mubr.f32.gmra.mrb[0].mxu0 %v242
    %v364 = vpop.f32.mrb[0].mxu0
    %v365 = vadd.f32 %v272, %v364
    %v366 = vpop.f32.mrb[0].mxu0
    %367 = vmatprep.mubr.f32.mxu0 0.0
    %368 = vmatmul.mubr.f32.gmra.mrb[0].mxu0 %v243
    %v369 = vpop.f32.mrb[0].mxu0
    %v370 = vadd.f32 %v272, %v369
    %v371 = vpop.f32.mrb[0].mxu0
    %372 = vmatprep.mubr.f32.mxu0 0.0
    %373 = vmatmul.mubr.f32.gmra.mrb[0].mxu0 %v244
    %v374 = vpop.f32.mrb[0].mxu0
    %v375 = vadd.f32 %v272, %v374
    %v376 = vpop.f32.mrb[0].mxu0
    %377 = vmatprep.mubr.f32.mxu0 0.0
    %378 = vmatmul.mubr.f32.gmra.mrb[0].mxu0 %v245
    %v379 = vpop.f32.mrb[0].mxu0
    %v380 = vadd.f32 %v272, %v379
    %v381 = vpop.f32.mrb[0].mxu0
    %382 = vmatprep.mubr.f32.mxu0 0.0
    %383 = vmatmul.mubr.f32.gmra.mrb[0].mxu0 %v246
    %v384 = vpop.f32.mrb[0].mxu0
    %v385 = vadd.f32 %v272, %v384
    %v386 = vpop.f32.mrb[0].mxu0
    %387 = vmatprep.mubr.f32.mxu0 0.0
    %388 = vmatmul.mubr.f32.gmra.mrb[0].mxu0 %v247
    %v389 = vpop.f32.mrb[0].mxu0
    %v390 = vadd.f32 %v272, %v389
    %v391 = vpop.f32.mrb[0].mxu0
    %392 = vmatprep.mubr.f32.mxu0 0.0
    %393 = vmatmul.mubr.f32.gmra.mrb[0].mxu0 %v248
    %v394 = vpop.f32.mrb[0].mxu0
    %v395 = vadd.f32 %v272, %v394
    %v396 = vpop.f32.mrb[0].mxu0
    %397 = vmatprep.mubr.f32.mxu0 0.0
    %398 = vmatmul.mubr.f32.gmra.mrb[0].mxu0 %v249
    %v399 = vpop.f32.mrb[0].mxu0
    %v400 = vadd.f32 %v272, %v399
    %v401 = vpop.f32.mrb[0].mxu0
    %402 = vmatprep.mubr.f32.mxu0 0.0
    %403 = vmatmul.mubr.f32.gmra.mrb[0].mxu0 %v250
    %v404 = vpop.f32.mrb[0].mxu0
    %v405 = vadd.f32 %v272, %v404
    %v406 = vpop.f32.mrb[0].mxu0
    %407 = vmatprep.mubr.f32.mxu0 0.0
    %408 = vmatmul.mubr.f32.gmra.mrb[0].mxu0 %v251
    %v409 = vpop.f32.mrb[0].mxu0
    %v410 = vadd.f32 %v272, %v409
    %v411 = vpop.f32.mrb[0].mxu0
    %412 = vmatprep.mubr.f32.mxu0 0.0
    %413 = vmatmul.mubr.f32.gmra.mrb[0].mxu0 %v252
    %v414 = vpop.f32.mrb[0].mxu0
    %v415 = vadd.f32 %v272, %v414
    %v416 = vpop.f32.mrb[0].mxu0
    %417 = vdwg.mxu0
    %v418 = vmax.f32 %v340, 0.0
    %v419 = vmax.f32 %v345, 0.0
    %v420 = vmax.f32 %v350, 0.0
    %v421 = vmax.f32 %v355, 0.0
    %v422 = vmax.f32 %v360, 0.0
    %v423 = vmax.f32 %v365, 0.0
    %v424 = vmax.f32 %v370, 0.0
    %v425 = vmax.f32 %v375, 0.0
    %v426 = vmax.f32 %v380, 0.0
    %v427 = vmax.f32 %v385, 0.0
    %v428 = vmax.f32 %v390, 0.0
    %v429 = vmax.f32 %v395, 0.0
    %v430 = vmax.f32 %v400, 0.0
    %v431 = vmax.f32 %v405, 0.0
    %v432 = vmax.f32 %v410, 0.0
    %v433 = vmax.f32 %v415, 0.0
    %435 = vset.pattern.permute.xlu0 0
    %436 = vperm.xlu0 %435, %v21
    %v437 = vpop.permute.xlu0 %436
    %439 = vmatprep.subr.mxu0 0.0
    %440 = vmatpush1.xpose.msra.mxu0 %v418
    %441 = vmatprep.subr.mxu0 0.0
    %442 = vmatpush1.xpose.msra.mxu0 %v419
    %443 = vmatprep.subr.mxu0 0.0
    %444 = vmatpush1.xpose.msra.mxu0 %v420
    %445 = vmatprep.subr.mxu0 0.0
    %446 = vmatpush1.xpose.msra.mxu0 %v421
    %447 = vmatprep.subr.mxu0 0.0
    %448 = vmatpush1.xpose.msra.mxu0 %v422
    %449 = vmatprep.subr.mxu0 0.0
    %450 = vmatpush1.xpose.msra.mxu0 %v423
    %451 = vmatprep.subr.mxu0 0.0
    %452 = vmatpush1.xpose.msra.mxu0 %v424
    %453 = vmatprep.subr.mxu0 0.0
    %454 = vmatpush1.xpose.msra.mxu0 %v425
    %455 = vmatprep.subr.mxu0 0.0
    %456 = vmatpush1.xpose.msra.mxu0 %v426
    %457 = vmatprep.subr.mxu0 0.0
    %458 = vmatpush1.xpose.msra.mxu0 %v427
    %459 = vmatprep.subr.mxu0 0.0
    %460 = vmatpush1.xpose.msra.mxu0 %v428
    %461 = vmatprep.subr.mxu0 0.0
    %462 = vmatpush1.xpose.msra.mxu0 %v429
    %463 = vmatprep.subr.mxu0 0.0
    %464 = vmatpush1.xpose.msra.mxu0 %v430
    %465 = vmatprep.subr.mxu0 0.0
    %466 = vmatpush1.xpose.msra.mxu0 %v431
    %467 = vmatprep.subr.mxu0 0.0
    %468 = vmatpush1.xpose.msra.mxu0 %v432
    %469 = vmatprep.subr.mxu0 0.0
    %470 = vmatpush1.xpose.msra.mxu0 %v433
    %471 = vmatprep.subr.mxu0 0.0
    %472 = vmatpush1.xpose.msra.mxu0 0.0
    %473 = vmatprep.subr.mxu0 0.0
    %474 = vmatpush1.xpose.msra.mxu0 0.0
    %475 = vmatprep.subr.mxu0 0.0
    %476 = vmatpush1.xpose.msra.mxu0 0.0
    %477 = vmatprep.subr.mxu0 0.0
    %478 = vmatpush1.xpose.msra.mxu0 0.0
    %479 = vmatprep.subr.mxu0 0.0
    %480 = vmatpush1.xpose.msra.mxu0 0.0
    %481 = vmatprep.subr.mxu0 0.0
    %482 = vmatpush1.xpose.msra.mxu0 0.0
    %483 = vmatprep.subr.mxu0 0.0
    %484 = vmatpush1.xpose.msra.mxu0 0.0
    %485 = vmatprep.subr.mxu0 0.0
    %486 = vmatpush1.xpose.msra.mxu0 0.0
    %487 = vmatprep.subr.mxu0 0.0
    %488 = vmatpush1.xpose.msra.mxu0 0.0
    %489 = vmatprep.subr.mxu0 0.0
    %490 = vmatpush1.xpose.msra.mxu0 0.0
    %491 = vmatprep.subr.mxu0 0.0
    %492 = vmatpush1.xpose.msra.mxu0 0.0
    %493 = vmatprep.subr.mxu0 0.0
    %494 = vmatpush1.xpose.msra.mxu0 0.0
    %495 = vmatprep.subr.mxu0 0.0
    %496 = vmatpush1.xpose.msra.mxu0 0.0
    %497 = vmatprep.subr.mxu0 0.0
    %498 = vmatpush1.xpose.msra.mxu0 0.0
    %499 = vmatprep.subr.mxu0 0.0
    %500 = vmatpush1.xpose.msra.mxu0 0.0
    %501 = vmatprep.subr.mxu0 0.0
    %502 = vmatpush1.xpose.msra.mxu0 0.0
    %503 = vmatprep.mubr.f32.mxu0 0.0
    %504 = vmatmul.mubr.f32.gmra.mrb[0].mxu0 %v20
    %v505 = vpop.f32.mrb[0].mxu0
    %v506 = vadd.f32 %v437, %v505
    %v507 = vpop.f32.mrb[0].mxu0
    %508 = vdwg.mxu0
    %509 = vst [vmem:[#allocation2] sm:$0x1] %v506
    // Predicated region
    $region18: #{tpu_custom_call.1} parent=1 // pred_check
      _
    $region19: #{tpu_custom_call.1} parent=1 // pred_check_branch
      %511 = sbr.rel (0) target = $region21
    $region20: #{tpu_custom_call.1} parent=1 // pred_region
      %s513 = ssub.s32 16, 16
      %514 = vsyncadd [#allocation3], %s513
      %s516 = sshll.u32 [#allocation2], 4
      %s517 = int_to_ptr.vmem [resolvable:$true] %s516
      %519 = dma.vmem_to_hbm [thread:$0]  %s517, 16, %s4, [#allocation3]
    $region21: #{tpu_custom_call.1} parent=1 // pred_fallthru
      _
    // Predicated region
    $region22: #{tpu_custom_call.1} parent=1 // pred_check
      _
    $region23: #{tpu_custom_call.1} parent=1 // pred_check_branch
      %521 = sbr.rel (0) target = $region25
    $region24: #{tpu_custom_call.1} parent=1 // pred_region
      %522 = dma.done [#allocation3], 16
    $region25: #{tpu_custom_call.1} parent=1 // pred_fallthru
      _
    %523 = vsyncpa [#allocation3], 1

</llo_original>
